<compile_context>
chip_gen: v7x
topology: tpu7x:2x2x1
jax: 0.10.0
libtpu: 0.0.40
codegen_flags: <defaults>
</compile_context>

<pallas_src>
import functools

import jax
import jax.numpy as jnp
from jax.experimental import pallas as pl
from jax.experimental.pallas import tpu as pltpu

HIDDEN = 64
LANE = 128            # TPU lane width; padded hidden / padded action dims
PAD_NEG = -1e9        # bias for padded action columns -> exp() == 0 exactly
DEFAULT_TILE_B = 1024


def _round_up(x, m):
    return ((x + m - 1) // m) * m


# ----------------------------------------------------------------------------
# Kernel
# ----------------------------------------------------------------------------
def actor_kernel(x_ref, w1_ref, b1_ref, w2_ref, b2_ref, o_ref):
    """softmax(relu(x @ W1 + b1) @ W2 + b2) over lane-padded (128-wide) dims."""
    # Linear 1 + ReLU (f32 MXU operands, f32 accumulation).
    h = jnp.dot(x_ref[...], w1_ref[...], preferred_element_type=jnp.float32)
    h = jnp.maximum(h + b1_ref[...], 0.0)

    # Linear 2.  Padded action columns carry a -1e9 bias so exp(pad) == 0 and
    # the padded lanes contribute nothing to the softmax denominator.
    logits = jnp.dot(h, w2_ref[...], preferred_element_type=jnp.float32)
    logits = logits + b2_ref[...]

    # Numerically stable softmax over the full 128-lane row.  Exact divide so
    # a Categorical/log-prob consumer sees rows that sum to 1 to fp precision.
    m = jnp.max(logits, axis=-1, keepdims=True)
    e = jnp.exp(logits - m)
    denom = jnp.sum(e, axis=-1, keepdims=True)
    o_ref[...] = (e / denom).astype(o_ref.dtype)


# ----------------------------------------------------------------------------
# One-time parameter preparation (hoisted out of the per-call hot path)
# ----------------------------------------------------------------------------
def prepare_actor_params(w1, b1, w2, b2):
    """Lane-pad weights/biases to 128-wide f32 arrays. Call ONCE per weight set.

    w1: (state_dim, hidden), b1: (hidden,) or (1, hidden)
    w2: (hidden, action_dim), b2: (action_dim,) or (1, action_dim)
    """
    state_dim, hidden = w1.shape
    action_dim = w2.shape[1]
    assert hidden <= LANE and action_dim <= LANE

    w1p = jnp.zeros((state_dim, LANE), jnp.float32).at[:, :hidden].set(
        w1.astype(jnp.float32))
    b1p = jnp.zeros((1, LANE), jnp.float32).at[:, :hidden].set(
        b1.reshape(1, hidden).astype(jnp.float32))
    w2p = jnp.zeros((LANE, LANE), jnp.float32).at[:hidden, :action_dim].set(
        w2.astype(jnp.float32))
    # Padded action columns get -1e9 bias -> exp() underflows to exactly 0.
    b2p = jnp.full((1, LANE), PAD_NEG, jnp.float32).at[:, :action_dim].set(
        b2.reshape(1, action_dim).astype(jnp.float32))
    return w1p, b1p, w2p, b2p


# ----------------------------------------------------------------------------
# Forward wrappers
# ----------------------------------------------------------------------------
def _choose_tiling(batch, tile_b):
    """Pad batch to a multiple of 8 (f32 sublanes), then pick a tile size that
    (a) avoids over-padding small batches and (b) yields >=2 grid steps when
    there is enough work, so the parallel axis uses both v7x TensorCores."""
    padded = _round_up(batch, 8)
    if padded > 8:
        tile_b = min(tile_b, _round_up(pl.cdiv(padded, 2), 8))
    tile_b = max(8, min(tile_b, padded))
    padded = _round_up(padded, tile_b)
    return tile_b, padded


@functools.partial(jax.jit, static_argnames=("tile_b",))
def actor_forward_padded(state, w1p, b1p, w2p, b2p, *, tile_b=DEFAULT_TILE_B):
    """Returns the lane-padded probability slab (padded_batch, 128).

    Rows [batch:] and columns [action_dim:] are padding (padded prob columns
    are exactly 0).  Prefer consuming this layout directly (or fusing the
    consumer) to avoid a post-kernel strided slice over HBM.
    """
    batch, state_dim = state.shape
    tile_b, padded_batch = _choose_tiling(batch, tile_b)
    if padded_batch != batch:
        state = jnp.pad(state, ((0, padded_batch - batch), (0, 0)))
    grid = (padded_batch // tile_b,)

    const = lambda i: (0, 0)  # weights VMEM-resident across all grid steps

    # Rough per-step VMEM footprint: double-buffered x & out tiles + weights.
    vmem_bytes = 2 * tile_b * (state_dim + LANE) * 4 + (state_dim + LANE + 2) * LANE * 4
    # Only raise the scoped-VMEM limit when we would exceed v5e's 16 MiB default.
    vmem_limit = int(vmem_bytes * 1.5) if vmem_bytes > (12 << 20) else None

    out = pl.pallas_call(
        actor_kernel,
        out_shape=jax.ShapeDtypeStruct((padded_batch, LANE), jnp.float32),
        grid_spec=pltpu.PrefetchScalarGridSpec(
            num_scalar_prefetch=0,
            grid=grid,
            in_specs=[
                pl.BlockSpec((tile_b, state_dim), lambda i: (i, 0)),  # state tile
                pl.BlockSpec((state_dim, LANE), const),               # W1
                pl.BlockSpec((1, LANE), const),                       # b1
                pl.BlockSpec((LANE, LANE), const),                    # W2
                pl.BlockSpec((1, LANE), const),                       # b2 (-1e9 pads)
            ],
            out_specs=pl.BlockSpec((tile_b, LANE), lambda i: (i, 0)),
        ),
        compiler_params=pltpu.CompilerParams(
            dimension_semantics=("parallel",),   # batch tiles split across TCs
            vmem_limit_bytes=vmem_limit,
        ),
    )(state, w1p, b1p, w2p, b2p)
    return out


@functools.partial(jax.jit, static_argnames=("action_dim", "tile_b"))
def actor_forward(state, w1p, b1p, w2p, b2p, *, action_dim,
                  tile_b=DEFAULT_TILE_B):
    """Convenience wrapper: (batch, action_dim) probabilities.

    Note: the final slice re-reads the padded slab; for large batches prefer
    actor_forward_padded + a fused consumer.
    """
    out = actor_forward_padded(state, w1p, b1p, w2p, b2p, tile_b=tile_b)
    return out[:state.shape[0], :action_dim]


def init_actor_params(key, state_dim, action_dim, hidden=HIDDEN):
    """PyTorch Linear default init: U[-1/sqrt(fan_in), +1/sqrt(fan_in)]."""
    k1, k2, k3, k4 = jax.random.split(key, 4)
    bound1 = 1.0 / jnp.sqrt(state_dim)
    bound2 = 1.0 / jnp.sqrt(hidden)
    w1 = jax.random.uniform(k1, (state_dim, hidden), jnp.float32, -bound1, bound1)
    b1 = jax.random.uniform(k2, (1, hidden), jnp.float32, -bound1, bound1)
    w2 = jax.random.uniform(k3, (hidden, action_dim), jnp.float32, -bound2, bound2)
    b2 = jax.random.uniform(k4, (1, action_dim), jnp.float32, -bound2, bound2)
    return w1, b1, w2, b2


if __name__ == "__main__":
    key = jax.random.PRNGKey(0)
    k_params, k_state = jax.random.split(key)

    batch = 2
    state_dim = 8
    action_dim = 4

    w1, b1, w2, b2 = init_actor_params(k_params, state_dim, action_dim)
    state = jax.random.normal(k_state, (batch, state_dim), jnp.float32)

    # One-time parameter prep (outside the per-step hot path).
    padded_params = prepare_actor_params(w1, b1, w2, b2)

    probs = actor_forward(state, *padded_params, action_dim=action_dim)
    probs = jax.block_until_ready(probs)

    # Pure-JAX f32 reference.
    h_ref = jnp.maximum(state @ w1 + b1, 0.0)
    logits_ref = h_ref @ w2 + b2
    probs_ref = jax.nn.softmax(logits_ref, axis=-1)

    assert probs.shape == (batch, action_dim)
    assert jnp.allclose(jnp.sum(probs, axis=-1), 1.0, atol=1e-5), "rows not normalized"
    assert jnp.allclose(probs, probs_ref, atol=1e-5), "mismatch vs JAX reference"

    print("KERNEL_OK")
</pallas_src>

<mosaic_0001>
module attributes {stable_mosaic.version = 11 : i64} {
  func.func @actor_kernel(%arg0: i32, %arg1: memref<8x8xf32, #tpu.memory_space<vmem>>, %arg2: memref<8x128xf32, #tpu.memory_space<vmem>>, %arg3: memref<1x128xf32, #tpu.memory_space<vmem>>, %arg4: memref<128x128xf32, #tpu.memory_space<vmem>>, %arg5: memref<1x128xf32, #tpu.memory_space<vmem>>, %arg6: memref<8x128xf32, #tpu.memory_space<vmem>>) attributes {dimension_semantics = [#tpu.dimension_semantics<parallel>], iteration_bounds = array<i64: 1>, scalar_prefetch = 0 : i64, scratch_operands = 0 : i64, tpu.core_type = #tpu.core_type<tc>, window_params = [{transform_indices = @transform_0, window_bounds = array<i64: 8, 8>}, {pipeline_mode = #tpu.pipeline_mode<synchronous>, transform_indices = @transform_1, window_bounds = array<i64: 8, 128>}, {pipeline_mode = #tpu.pipeline_mode<synchronous>, transform_indices = @transform_2, window_bounds = array<i64: 1, 128>}, {pipeline_mode = #tpu.pipeline_mode<synchronous>, transform_indices = @transform_3, window_bounds = array<i64: 128, 128>}, {pipeline_mode = #tpu.pipeline_mode<synchronous>, transform_indices = @transform_4, window_bounds = array<i64: 1, 128>}, {transform_indices = @transform_5, window_bounds = array<i64: 8, 128>}]} {
    %c0 = arith.constant 0 : index
    %c0_0 = arith.constant 0 : index
    %0 = vector.load %arg1[%c0, %c0_0] : memref<8x8xf32, #tpu.memory_space<vmem>>, vector<8x8xf32>
    %c0_1 = arith.constant 0 : index
    %c0_2 = arith.constant 0 : index
    %1 = vector.load %arg2[%c0_1, %c0_2] : memref<8x128xf32, #tpu.memory_space<vmem>>, vector<8x128xf32>
    %cst = arith.constant dense<0.000000e+00> : vector<8x128xf32>
    %2 = tpu.matmul %0, %1, %cst {dimension_numbers = #tpu.dot_dimension_numbers<[1], [0], [0], [1], [0, 0, 1, 1], [], []>} : vector<8x8xf32>, vector<8x128xf32>, vector<8x128xf32> -> vector<8x128xf32>
    %c0_3 = arith.constant 0 : index
    %c0_4 = arith.constant 0 : index
    %3 = vector.load %arg3[%c0_3, %c0_4] : memref<1x128xf32, #tpu.memory_space<vmem>>, vector<1x128xf32>
    %4 = vector.broadcast %3 : vector<1x128xf32> to vector<8x128xf32>
    %5 = arith.addf %2, %4 : vector<8x128xf32>
    %cst_5 = arith.constant 0.000000e+00 : f32
    %6 = vector.broadcast %cst_5 : f32 to vector<8x128xf32>
    %7 = arith.maximumf %5, %6 : vector<8x128xf32>
    %c0_6 = arith.constant 0 : index
    %c0_7 = arith.constant 0 : index
    %8 = vector.load %arg4[%c0_6, %c0_7] : memref<128x128xf32, #tpu.memory_space<vmem>>, vector<128x128xf32>
    %cst_8 = arith.constant dense<0.000000e+00> : vector<8x128xf32>
    %9 = tpu.matmul %7, %8, %cst_8 {dimension_numbers = #tpu.dot_dimension_numbers<[1], [0], [0], [1], [0, 0, 1, 1], [], []>} : vector<8x128xf32>, vector<128x128xf32>, vector<8x128xf32> -> vector<8x128xf32>
    %c0_9 = arith.constant 0 : index
    %c0_10 = arith.constant 0 : index
    %10 = vector.load %arg5[%c0_9, %c0_10] : memref<1x128xf32, #tpu.memory_space<vmem>>, vector<1x128xf32>
    %11 = vector.broadcast %10 : vector<1x128xf32> to vector<8x128xf32>
    %12 = arith.addf %9, %11 : vector<8x128xf32>
    %cst_11 = arith.constant dense<0xFF800000> : vector<8xf32>
    %13 = vector.multi_reduction <maximumf>, %12, %cst_11 [1] : vector<8x128xf32> to vector<8xf32>
    %14 = vector.shape_cast %13 : vector<8xf32> to vector<8x1xf32>
    %15 = vector.broadcast %14 : vector<8x1xf32> to vector<8x128xf32>
    %16 = arith.subf %12, %15 : vector<8x128xf32>
    %17 = math.exp %16 : vector<8x128xf32>
    %cst_12 = arith.constant dense<0.000000e+00> : vector<8xf32>
    %18 = vector.multi_reduction <add>, %17, %cst_12 [1] : vector<8x128xf32> to vector<8xf32>
    %19 = vector.shape_cast %18 : vector<8xf32> to vector<8x1xf32>
    %20 = vector.broadcast %19 : vector<8x1xf32> to vector<8x128xf32>
    %21 = arith.divf %17, %20 : vector<8x128xf32>
    %c0_13 = arith.constant 0 : index
    %c0_14 = arith.constant 0 : index
    %22 = vector.load %arg6[%c0_13, %c0_14] : memref<8x128xf32, #tpu.memory_space<vmem>>, vector<8x128xf32>
    tpu.vector_store %arg6[%c0_13, %c0_14], %21 {strides = array<i32>} : memref<8x128xf32, #tpu.memory_space<vmem>>, vector<8x128xf32>,
    return
  }
  func.func @transform_0(%arg0: i32) -> (i32, i32) {
    %c0_i32 = arith.constant 0 : i32
    %c0_i32_0 = arith.constant 0 : i32
    return %arg0, %c0_i32 : i32, i32
  }
  func.func @transform_1(%arg0: i32) -> (i32, i32) {
    %c0_i32 = arith.constant 0 : i32
    %c0_i32_0 = arith.constant 0 : i32
    %c0_i32_1 = arith.constant 0 : i32
    return %c0_i32, %c0_i32_0 : i32, i32
  }
  func.func @transform_2(%arg0: i32) -> (i32, i32) {
    %c0_i32 = arith.constant 0 : i32
    %c0_i32_0 = arith.constant 0 : i32
    %c0_i32_1 = arith.constant 0 : i32
    return %c0_i32, %c0_i32_0 : i32, i32
  }
  func.func @transform_3(%arg0: i32) -> (i32, i32) {
    %c0_i32 = arith.constant 0 : i32
    %c0_i32_0 = arith.constant 0 : i32
    %c0_i32_1 = arith.constant 0 : i32
    return %c0_i32, %c0_i32_0 : i32, i32
  }
  func.func @transform_4(%arg0: i32) -> (i32, i32) {
    %c0_i32 = arith.constant 0 : i32
    %c0_i32_0 = arith.constant 0 : i32
    %c0_i32_1 = arith.constant 0 : i32
    return %c0_i32, %c0_i32_0 : i32, i32
  }
  func.func @transform_5(%arg0: i32) -> (i32, i32) {
    %c0_i32 = arith.constant 0 : i32
    %c0_i32_0 = arith.constant 0 : i32
    return %arg0, %c0_i32 : i32, i32
  }
}

</mosaic_0001>

<llo_original>
// kernel: actor_forward_padded.1
$region0: #{actor_forward_padded.1}
  #allocation0 [shape = 'u32[]', space=smem, size = 0x4, offset = 0x4, fixed_abs, tag = 'smem constant byte address 0x4 - core index']
  #allocation1 [shape = 'u32[144,128]{1,0:T(1,128)}', space=vmem, size = 0x12000, scoped, tag = 'internal scratch']
  %s0 = inlined_call_operand.vmem [shape: f32[8,8], index: 0, kind: input, shape index: {}]
  %s1 = inlined_call_operand.vmem [shape: f32[8,128], index: 1, kind: input, shape index: {}]
  %s2 = inlined_call_operand.vmem [shape: f32[1,128], index: 2, kind: input, shape index: {}]
  %s3 = inlined_call_operand.hbm [shape: f32[128,128], index: 3, kind: input, shape index: {}]
  %s4 = inlined_call_operand.vmem [shape: f32[1,128], index: 4, kind: input, shape index: {}]
  %s5 = inlined_call_operand.hbm [shape: f32[8,128], index: 5, kind: output, shape index: {}]
  %s6 = sld [smem:[#allocation0]]
  $region34: #{actor_forward_padded.1} parent=0
    _
  %s8 = ssub.s32 1, %s6
  %s9 = scalar_select 0, %s8, %s6
  $region1: #{actor_forward_padded.1} parent=0
    #allocation2 [shape = 'u8[65536]{0}', space=vmem, size = 0x10000, scoped, tag = 'input window, operand 3, single buffered']
    #allocation3 [shape = 's32[1]{0}', space=sflag, size = 0x4, scoped, tag = 'scoped memory for actor_forward_padded.1']
    #allocation4 [shape = 's32[1]{0}', space=sflag, size = 0x4, scoped, tag = 'scoped memory for actor_forward_padded.1']
    #allocation5 [shape = 'u8[4096]{0}', space=vmem, size = 0x1000, scoped, tag = 'output window, operand 0, single buffered']
    %10 = vsyncpa [#allocation3], 0
    %11 = vsyncpa [#allocation4], 0
    // Predicated region
    $region2: #{actor_forward_padded.1} parent=1 // pred_check
      _
    $region3: #{actor_forward_padded.1} parent=1 // pred_check_branch
      %13 = sbr.rel (0) target = $region5
    $region4: #{actor_forward_padded.1} parent=1 // pred_region
      _
    $region5: #{actor_forward_padded.1} parent=1 // pred_fallthru
      _
    // Predicated region
    $region6: #{actor_forward_padded.1} parent=1 // pred_check
      _
    $region7: #{actor_forward_padded.1} parent=1 // pred_check_branch
      %15 = sbr.rel (0) target = $region9
    $region8: #{actor_forward_padded.1} parent=1 // pred_region
      _
    $region9: #{actor_forward_padded.1} parent=1 // pred_fallthru
      _
    // Predicated region
    $region10: #{actor_forward_padded.1} parent=1 // pred_check
      _
    $region11: #{actor_forward_padded.1} parent=1 // pred_check_branch
      %17 = sbr.rel (0) target = $region13
    $region12: #{actor_forward_padded.1} parent=1 // pred_region
      _
    $region13: #{actor_forward_padded.1} parent=1 // pred_fallthru
      _
    // Predicated region
    $region14: #{actor_forward_padded.1} parent=1 // pred_check
      _
    $region15: #{actor_forward_padded.1} parent=1 // pred_check_branch
      %19 = sbr.rel (0) target = $region17
    $region16: #{actor_forward_padded.1} parent=1 // pred_region
      %s21 = ssub.s32 2048, 2048
      %22 = vsyncadd [#allocation3], %s21
      %s23 = sshll.u32 [#allocation2], 4
      %s24 = int_to_ptr.vmem [resolvable:$true] %s23
      %29 = dma.hbm_to_vmem [thread:$0]  %s3, 2048, %s24, [#allocation3], 128, 128, 8
    $region17: #{actor_forward_padded.1} parent=1 // pred_fallthru
      _
    // Predicated region
    $region18: #{actor_forward_padded.1} parent=1 // pred_check
      _
    $region19: #{actor_forward_padded.1} parent=1 // pred_check_branch
      %31 = sbr.rel (0) target = $region21
    $region20: #{actor_forward_padded.1} parent=1 // pred_region
      _
    $region21: #{actor_forward_padded.1} parent=1 // pred_fallthru
      _
    // Predicated region
    $region22: #{actor_forward_padded.1} parent=1 // pred_check
      _
    $region23: #{actor_forward_padded.1} parent=1 // pred_check_branch
      %33 = sbr.rel (0) target = $region25
    $region24: #{actor_forward_padded.1} parent=1 // pred_region
      %34 = dma.done [#allocation3], 2048
    $region25: #{actor_forward_padded.1} parent=1 // pred_fallthru
      _
    %v35 = vld [vmem:[%s0] sm:$0xff]
    %v36 = vld [vmem:[%s1] sm:$0xff]
    %v37 = vld [vmem:[%s2] sm:$0x1]
    %v39 = vlaneseq
    %v40 = vshrl.u32 %v39, 7
    %v41 = vsub.s32 0, %v40
    %v42 = vrot.slane %v37, %v41
    %vm44 = vcmask 64512
    %v46 = vsel %vm44, %v35, 0
    %48 = vmatprep.subr.mxu0 0.0
    %49 = vmatpush1.msra.mxu0 %v36
    %50 = vmatprep.subr.mxu0 0.0
    %51 = vmatpush1.msra.mxu0 0.0
    %52 = vmatprep.subr.mxu0 0.0
    %53 = vmatpush1.msra.mxu0 0.0
    %54 = vmatprep.subr.mxu0 0.0
    %55 = vmatpush1.msra.mxu0 0.0
    %56 = vmatprep.subr.mxu0 0.0
    %57 = vmatpush1.msra.mxu0 0.0
    %58 = vmatprep.subr.mxu0 0.0
    %59 = vmatpush1.msra.mxu0 0.0
    %60 = vmatprep.subr.mxu0 0.0
    %61 = vmatpush1.msra.mxu0 0.0
    %62 = vmatprep.subr.mxu0 0.0
    %63 = vmatpush1.msra.mxu0 0.0
    %64 = vmatprep.subr.mxu0 0.0
    %65 = vmatpush1.msra.mxu0 0.0
    %66 = vmatprep.subr.mxu0 0.0
    %67 = vmatpush1.msra.mxu0 0.0
    %68 = vmatprep.subr.mxu0 0.0
    %69 = vmatpush1.msra.mxu0 0.0
    %70 = vmatprep.subr.mxu0 0.0
    %71 = vmatpush1.msra.mxu0 0.0
    %72 = vmatprep.subr.mxu0 0.0
    %73 = vmatpush1.msra.mxu0 0.0
    %74 = vmatprep.subr.mxu0 0.0
    %75 = vmatpush1.msra.mxu0 0.0
    %76 = vmatprep.subr.mxu0 0.0
    %77 = vmatpush1.msra.mxu0 0.0
    %78 = vmatprep.subr.mxu0 0.0
    %79 = vmatpush1.msra.mxu0 0.0
    %80 = vmatprep.subr.mxu0 0.0
    %81 = vmatpush1.msra.mxu0 0.0
    %82 = vmatprep.subr.mxu0 0.0
    %83 = vmatpush1.msra.mxu0 0.0
    %84 = vmatprep.subr.mxu0 0.0
    %85 = vmatpush1.msra.mxu0 0.0
    %86 = vmatprep.subr.mxu0 0.0
    %87 = vmatpush1.msra.mxu0 0.0
    %88 = vmatprep.subr.mxu0 0.0
    %89 = vmatpush1.msra.mxu0 0.0
    %90 = vmatprep.subr.mxu0 0.0
    %91 = vmatpush1.msra.mxu0 0.0
    %92 = vmatprep.subr.mxu0 0.0
    %93 = vmatpush1.msra.mxu0 0.0
    %94 = vmatprep.subr.mxu0 0.0
    %95 = vmatpush1.msra.mxu0 0.0
    %96 = vmatprep.subr.mxu0 0.0
    %97 = vmatpush1.msra.mxu0 0.0
    %98 = vmatprep.subr.mxu0 0.0
    %99 = vmatpush1.msra.mxu0 0.0
    %100 = vmatprep.subr.mxu0 0.0
    %101 = vmatpush1.msra.mxu0 0.0
    %102 = vmatprep.subr.mxu0 0.0
    %103 = vmatpush1.msra.mxu0 0.0
    %104 = vmatprep.subr.mxu0 0.0
    %105 = vmatpush1.msra.mxu0 0.0
    %106 = vmatprep.subr.mxu0 0.0
    %107 = vmatpush1.msra.mxu0 0.0
    %108 = vmatprep.subr.mxu0 0.0
    %109 = vmatpush1.msra.mxu0 0.0
    %110 = vmatprep.subr.mxu0 0.0
    %111 = vmatpush1.msra.mxu0 0.0
    %112 = vmatprep.mubr.f32.mxu0 0.0
    %113 = vmatmul.mubr.f32.gmra.mrb[0].mxu0 %v46
    %v114 = vpop.f32.mrb[0].mxu0
    %v115 = vadd.f32 %v42, %v114
    %v116 = vpop.f32.mrb[0].mxu0
    %117 = vdwg.mxu0
    %v118 = vmax.f32 %v115, 0.0
    %v119 = vld [vmem:[#allocation2] sm:$0xff]
    %v120 = vld [vmem:[#allocation2 + $0x8] sm:$0xff]
    %v121 = vld [vmem:[#allocation2 + $0x10] sm:$0xff]
    %v122 = vld [vmem:[#allocation2 + $0x18] sm:$0xff]
    %v123 = vld [vmem:[#allocation2 + $0x20] sm:$0xff]
    %v124 = vld [vmem:[#allocation2 + $0x28] sm:$0xff]
    %v125 = vld [vmem:[#allocation2 + $0x30] sm:$0xff]
    %v126 = vld [vmem:[#allocation2 + $0x38] sm:$0xff]
    %v127 = vld [vmem:[#allocation2 + $0x40] sm:$0xff]
    %v128 = vld [vmem:[#allocation2 + $0x48] sm:$0xff]
    %v129 = vld [vmem:[#allocation2 + $0x50] sm:$0xff]
    %v130 = vld [vmem:[#allocation2 + $0x58] sm:$0xff]
    %v131 = vld [vmem:[#allocation2 + $0x60] sm:$0xff]
    %v132 = vld [vmem:[#allocation2 + $0x68] sm:$0xff]
    %v133 = vld [vmem:[#allocation2 + $0x70] sm:$0xff]
    %v134 = vld [vmem:[#allocation2 + $0x78] sm:$0xff]
    %v135 = vld [vmem:[%s4] sm:$0x1]
    %v137 = vlaneseq
    %v138 = vshrl.u32 %v137, 7
    %v139 = vsub.s32 0, %v138
    %v140 = vrot.slane %v135, %v139
    %142 = vmatprep.subr.mxu0 0.0
    %143 = vmatpush1.msra.mxu0 %v119
    %144 = vmatprep.subr.mxu0 0.0
    %145 = vmatpush1.msra.mxu0 %v120
    %146 = vmatprep.subr.mxu0 0.0
    %147 = vmatpush1.msra.mxu0 %v121
    %148 = vmatprep.subr.mxu0 0.0
    %149 = vmatpush1.msra.mxu0 %v122
    %150 = vmatprep.subr.mxu0 0.0
    %151 = vmatpush1.msra.mxu0 %v123
    %152 = vmatprep.subr.mxu0 0.0
    %153 = vmatpush1.msra.mxu0 %v124
    %154 = vmatprep.subr.mxu0 0.0
    %155 = vmatpush1.msra.mxu0 %v125
    %156 = vmatprep.subr.mxu0 0.0
    %157 = vmatpush1.msra.mxu0 %v126
    %158 = vmatprep.subr.mxu0 0.0
    %159 = vmatpush1.msra.mxu0 %v127
    %160 = vmatprep.subr.mxu0 0.0
    %161 = vmatpush1.msra.mxu0 %v128
    %162 = vmatprep.subr.mxu0 0.0
    %163 = vmatpush1.msra.mxu0 %v129
    %164 = vmatprep.subr.mxu0 0.0
    %165 = vmatpush1.msra.mxu0 %v130
    %166 = vmatprep.subr.mxu0 0.0
    %167 = vmatpush1.msra.mxu0 %v131
    %168 = vmatprep.subr.mxu0 0.0
    %169 = vmatpush1.msra.mxu0 %v132
    %170 = vmatprep.subr.mxu0 0.0
    %171 = vmatpush1.msra.mxu0 %v133
    %172 = vmatprep.subr.mxu0 0.0
    %173 = vmatpush1.msra.mxu0 %v134
    %174 = vmatprep.subr.mxu0 0.0
    %175 = vmatpush1.msra.mxu0 0.0
    %176 = vmatprep.subr.mxu0 0.0
    %177 = vmatpush1.msra.mxu0 0.0
    %178 = vmatprep.subr.mxu0 0.0
    %179 = vmatpush1.msra.mxu0 0.0
    %180 = vmatprep.subr.mxu0 0.0
    %181 = vmatpush1.msra.mxu0 0.0
    %182 = vmatprep.subr.mxu0 0.0
    %183 = vmatpush1.msra.mxu0 0.0
    %184 = vmatprep.subr.mxu0 0.0
    %185 = vmatpush1.msra.mxu0 0.0
    %186 = vmatprep.subr.mxu0 0.0
    %187 = vmatpush1.msra.mxu0 0.0
    %188 = vmatprep.subr.mxu0 0.0
    %189 = vmatpush1.msra.mxu0 0.0
    %190 = vmatprep.subr.mxu0 0.0
    %191 = vmatpush1.msra.mxu0 0.0
    %192 = vmatprep.subr.mxu0 0.0
    %193 = vmatpush1.msra.mxu0 0.0
    %194 = vmatprep.subr.mxu0 0.0
    %195 = vmatpush1.msra.mxu0 0.0
    %196 = vmatprep.subr.mxu0 0.0
    %197 = vmatpush1.msra.mxu0 0.0
    %198 = vmatprep.subr.mxu0 0.0
    %199 = vmatpush1.msra.mxu0 0.0
    %200 = vmatprep.subr.mxu0 0.0
    %201 = vmatpush1.msra.mxu0 0.0
    %202 = vmatprep.subr.mxu0 0.0
    %203 = vmatpush1.msra.mxu0 0.0
    %204 = vmatprep.subr.mxu0 0.0
    %205 = vmatpush1.msra.mxu0 0.0
    %206 = vmatprep.mubr.f32.mxu0 0.0
    %207 = vmatmul.mubr.f32.gmra.mrb[0].mxu0 %v118
    %v208 = vpop.f32.mrb[0].mxu0
    %v209 = vadd.f32 %v140, %v208
    %v210 = vpop.f32.mrb[0].mxu0
    %211 = vdwg.mxu0
    %212 = vmax.xlane.f32.xlu0 %v209
    %v213 = vpop.xlane.xlu0 %212
    %v214 = vsub.f32 %v209, %v213
    %v215 = vmul.f32 %v214, 1.442695
    %v216 = vpow.pop %v215
    %217 = vadd.xlane.f32.xlu0 %v216
    %v218 = vpop.xlane.xlu0 %217
    %v219 = vrcp.pop %v218
    %v220 = vmul.f32 %v216, %v219
    %221 = vst [vmem:[#allocation5] sm:$0xff] %v220
    // Predicated region
    $region26: #{actor_forward_padded.1} parent=1 // pred_check
      _
    $region27: #{actor_forward_padded.1} parent=1 // pred_check_branch
      %223 = sbr.rel (0) target = $region29
    $region28: #{actor_forward_padded.1} parent=1 // pred_region
      %s225 = ssub.s32 128, 128
      %226 = vsyncadd [#allocation4], %s225
      %s228 = sshll.u32 [#allocation5], 4
      %s229 = int_to_ptr.vmem [resolvable:$true] %s228
      %231 = dma.vmem_to_hbm [thread:$0]  %s229, 128, %s5, [#allocation4]
    $region29: #{actor_forward_padded.1} parent=1 // pred_fallthru
      _
    // Predicated region
    $region30: #{actor_forward_padded.1} parent=1 // pred_check
      _
    $region31: #{actor_forward_padded.1} parent=1 // pred_check_branch
      %233 = sbr.rel (0) target = $region33
    $region32: #{actor_forward_padded.1} parent=1 // pred_region
      %234 = dma.done [#allocation4], 128
    $region33: #{actor_forward_padded.1} parent=1 // pred_fallthru
      _
    %235 = vsyncpa [#allocation3], 1
    %236 = vsyncpa [#allocation4], 1

</llo_original>
